<compile_context>
chip_gen: v6e
topology: v6e:2x2x1
jax: 0.10.0
libtpu: 0.0.40
codegen_flags: <defaults>
</compile_context>

<pallas_src>
import jax
import jax.numpy as jnp
from jax import lax
from jax.experimental import pallas as pl
from jax.experimental.pallas import tpu as pltpu

_LANE = 128


def _round_up(x, m):
    return ((x + m - 1) // m) * m


def _pick_block_rows(hout, wout, kc, coutp, itemsize, dilation,
                     budget_bytes=10 * 1024 * 1024):
    """Pick the output-row band height so double-buffered blocks + f32 acc fit a
    conservative VMEM budget (safe on v5e 16MiB-scoped and v7x 64MiB-physical)."""
    halo = 2 * dilation
    per_row = 2 * wout * kc * itemsize            # folded-input band rows, 2 buffers
    per_row += 2 * 2 * wout * coutp * itemsize    # x2 + out blocks, 2 buffers each
    per_row += wout * coutp * 4                   # f32 accumulator scratch
    fixed = 2 * halo * wout * kc * itemsize       # halo rows of the input band
    th = (budget_bytes - fixed) // max(per_row, 1)
    th = int(max(1, min(th, hout)))
    if th >= 8:
        th -= th % 8
    return th


def _make_kernel(dilation: int, block_rows: int):
    d = dilation
    th = block_rows

    def kernel(xb_ref, x2_ref, w_ref, b_ref, o_ref, acc_ref):
        # xb_ref : (1, TH + 2d, Wout, Kc)   kx-folded input band (Kc = 3*Cin)
        # x2_ref : (1, TH, Wout, Coutp)
        # w_ref  : (3, Kc, Coutp)           per-ky folded weights (resident)
        # b_ref  : (1, Coutp)
        # o_ref  : (1, TH, Wout, Coutp)
        # acc_ref: (TH, Wout, Coutp) f32 VMEM scratch accumulator
        band = xb_ref[0]                                   # (TH+2d, Wout, Kc)

        # 3 per-ky taps: leading-H slice (free, no relayout) + channel contraction
        # on the MXU with K = 3*Cin.
        for ky in range(3):
            lhs = band[ky * d:ky * d + th]                 # (TH, Wout, Kc)
            tap = lax.dot_general(
                lhs, w_ref[ky],
                dimension_numbers=(((2,), (0,)), ((), ())),
                preferred_element_type=jnp.float32,
            )                                              # (TH, Wout, Coutp)
            if ky == 0:
                acc_ref[...] = tap
            else:
                acc_ref[...] += tap

        res = acc_ref[...] + b_ref[0][None, None, :].astype(jnp.float32)
        res = jnp.maximum(res, 0.0)                        # ReLU
        res = res + x2_ref[0].astype(jnp.float32)          # + x2 residual
        o_ref[0] = res.astype(o_ref.dtype)                 # lane-dense store (Coutp % 128 == 0)

    return kernel


def exchange_conv(x1_nchw, x2_nchw, weight_oihw, bias, dilation=1, block_rows=None):
    """Pallas implementation of ExchangeConv.forward(x1, x2).

    x1_nchw     : (N, Cin, H, W)
    x2_nchw     : (N, Cout, Hout, Wout)   (must match conv output shape)
    weight_oihw : (Cout, Cin, 3, 3)       (PyTorch layout)
    bias        : (Cout,)
    """
    pad = 1  # fixed in the module: padding=1
    d = int(dilation)
    n, cin, h, w = x1_nchw.shape
    cout = weight_oihw.shape[0]
    hout = h + 2 * pad - 2 * d
    wout = w + 2 * pad - 2 * d
    assert x2_nchw.shape == (n, cout, hout, wout)

    dtype = x1_nchw.dtype
    itemsize = jnp.dtype(dtype).itemsize
    kc = 3 * cin                       # kx-folded contraction size
    coutp = _round_up(cout, _LANE)     # lane-dense output channels

    # ---- glue (plain JAX): layout, spatial pad, kx-fold -------------------------
    x1 = jnp.transpose(x1_nchw, (0, 2, 3, 1))                     # NHWC
    x2 = jnp.transpose(x2_nchw, (0, 2, 3, 1))                     # NHWC
    xp = jnp.pad(x1, ((0, 0), (pad, pad), (pad, pad), (0, 0)))    # (N, Hout+2d, W+2, Cin)

    # Fold the 3 kx taps onto the channel axis: only free leading-H slices remain
    # inside the kernel (no sublane-misaligned W shifts -> no relayout copies).
    xf = jnp.concatenate(
        [xp[:, :, kx * d:kx * d + wout, :] for kx in range(3)], axis=-1
    )                                                             # (N, Hout+2d, Wout, 3*Cin)

    # ---- H-band tiling sized against the VMEM budget ----------------------------
    if block_rows is None:
        block_rows = _pick_block_rows(hout, wout, kc, coutp, itemsize, d)
    th = int(min(block_rows, hout))
    n_t = int(pl.cdiv(hout, th))
    houtp = n_t * th
    thb = th + 2 * d

    # Pad H so every band is full, then materialize the overlapping halo bands so
    # all BlockSpecs stay plain Blocked (fully auto-pipelined, both axes parallel).
    xf = jnp.pad(xf, ((0, 0), (0, houtp + 2 * d - xf.shape[1]), (0, 0), (0, 0)))
    xb = jnp.stack([xf[:, t * th:t * th + thb] for t in range(n_t)], axis=1)
    xb = xb.reshape(n * n_t, thb, wout, kc)                       # (N*nT, THb, Wout, Kc)

    # x2 / output padded to lane-dense channel count and banded H.
    x2p = jnp.pad(x2, ((0, 0), (0, houtp - hout), (0, 0), (0, coutp - cout)))

    # Weights: OIHW -> (ky, kx*Cin + c, o), matching the input fold order.
    w_hwio = jnp.transpose(weight_oihw, (2, 3, 1, 0))             # (3, 3, Cin, Cout)
    w_fold = w_hwio.reshape(3, kc, cout)
    w_fold = jnp.pad(w_fold, ((0, 0), (0, 0), (0, coutp - cout)))
    b2d = jnp.pad(bias.reshape(1, cout), ((0, 0), (0, coutp - cout)))

    out_nhwc_p = pl.pallas_call(
        _make_kernel(d, th),
        out_shape=jax.ShapeDtypeStruct((n, houtp, wout, coutp), dtype),
        grid_spec=pltpu.PrefetchScalarGridSpec(
            num_scalar_prefetch=0,
            grid=(n, n_t),
            in_specs=[
                pl.BlockSpec((1, thb, wout, kc),
                             lambda b, t: (b * n_t + t, 0, 0, 0)),
                pl.BlockSpec((1, th, wout, coutp), lambda b, t: (b, t, 0, 0)),
                pl.BlockSpec((3, kc, coutp), lambda b, t: (0, 0, 0)),
                pl.BlockSpec((1, coutp), lambda b, t: (0, 0)),
            ],
            out_specs=pl.BlockSpec((1, th, wout, coutp), lambda b, t: (b, t, 0, 0)),
            scratch_shapes=[pltpu.VMEM((th, wout, coutp), jnp.float32)],
        ),
        compiler_params=pltpu.CompilerParams(
            dimension_semantics=("parallel", "parallel"),
            vmem_limit_bytes=32 * 1024 * 1024,
        ),
    )(xb, x2p, w_fold, b2d)

    out = out_nhwc_p[:, :hout, :, :cout]
    return jnp.transpose(out, (0, 3, 1, 2))                       # back to NCHW


def _reference(x1_nchw, x2_nchw, weight_oihw, bias, dilation=1):
    """Pure-JAX reference (lax conv) for a correctness check."""
    out = lax.conv_general_dilated(
        x1_nchw, weight_oihw,
        window_strides=(1, 1),
        padding=((1, 1), (1, 1)),
        rhs_dilation=(dilation, dilation),
        dimension_numbers=("NCHW", "OIHW", "NCHW"),
    )
    out = out + bias[None, :, None, None]
    out = jnp.maximum(out, 0.0)
    return out + x2_nchw


if __name__ == "__main__":
    # Small deterministic example: N=2, Cin=4, Cout=8, H=W=16.
    N, CIN, COUT, H, W = 2, 4, 8, 16, 16

    key = jax.random.PRNGKey(0)
    k_x1, k_x2a, k_x2b, k_w, k_b = jax.random.split(key, 5)

    x1 = jax.random.normal(k_x1, (N, CIN, H, W), dtype=jnp.float32)

    # kaiming_normal_ (fan_in, gain=sqrt(2)) as in the module's __init__.
    fan_in = CIN * 3 * 3
    weight = jax.random.normal(k_w, (COUT, CIN, 3, 3), dtype=jnp.float32) * jnp.sqrt(
        2.0 / fan_in)
    # PyTorch Conv2d default bias init: U(-1/sqrt(fan_in), 1/sqrt(fan_in)).
    bound = 1.0 / jnp.sqrt(fan_in)
    bias = jax.random.uniform(k_b, (COUT,), minval=-bound, maxval=bound,
                              dtype=jnp.float32)

    ok = True
    for dil, k_x2 in ((1, k_x2a), (2, k_x2b)):
        hout = H + 2 - 2 * dil
        wout = W + 2 - 2 * dil
        x2 = jax.random.normal(k_x2, (N, COUT, hout, wout), dtype=jnp.float32)

        # block_rows=8 so the (batch, H-band) grid is actually exercised.
        out = exchange_conv(x1, x2, weight, bias, dilation=dil, block_rows=8)
        out = jax.block_until_ready(out)

        ref = _reference(x1, x2, weight, bias, dilation=dil)
        assert out.shape == ref.shape == (N, COUT, hout, wout)
        ok = ok and bool(jnp.allclose(out, ref, atol=1e-4, rtol=1e-4))

    assert ok, "mismatch vs reference"
    print("KERNEL_OK")
</pallas_src>

<mosaic_0001>
module attributes {stable_mosaic.version = 11 : i64} {
  func.func @kernel(%arg0: i32, %arg1: i32, %arg2: memref<1x10x16x12xf32, #tpu.memory_space<vmem>>, %arg3: memref<1x8x16x128xf32, #tpu.memory_space<vmem>>, %arg4: memref<3x12x128xf32, #tpu.memory_space<vmem>>, %arg5: memref<1x128xf32, #tpu.memory_space<vmem>>, %arg6: memref<1x8x16x128xf32, #tpu.memory_space<vmem>>, %arg7: memref<8x16x128xf32, #tpu.memory_space<vmem>>) attributes {dimension_semantics = [#tpu.dimension_semantics<parallel>, #tpu.dimension_semantics<parallel>], iteration_bounds = array<i64: 2, 2>, scalar_prefetch = 0 : i64, scratch_operands = 1 : i64, tpu.core_type = #tpu.core_type<tc>, window_params = [{transform_indices = @transform_0, window_bounds = array<i64: 1, 10, 16, 12>}, {transform_indices = @transform_1, window_bounds = array<i64: 1, 8, 16, 128>}, {pipeline_mode = #tpu.pipeline_mode<synchronous>, transform_indices = @transform_2, window_bounds = array<i64: 3, 12, 128>}, {pipeline_mode = #tpu.pipeline_mode<synchronous>, transform_indices = @transform_3, window_bounds = array<i64: 1, 128>}, {transform_indices = @transform_4, window_bounds = array<i64: 1, 8, 16, 128>}]} {
    %c0 = arith.constant 0 : index
    %c0_0 = arith.constant 0 : index
    %c0_1 = arith.constant 0 : index
    %c0_2 = arith.constant 0 : index
    %0 = vector.load %arg2[%c0, %c0_0, %c0_1, %c0_2] : memref<1x10x16x12xf32, #tpu.memory_space<vmem>>, vector<1x10x16x12xf32>
    %1 = vector.shape_cast %0 : vector<1x10x16x12xf32> to vector<10x16x12xf32>
    %2 = vector.extract_strided_slice %1 {offsets = [0, 0, 0], sizes = [8, 16, 12], strides = [1, 1, 1]} : vector<10x16x12xf32> to vector<8x16x12xf32>
    %c0_3 = arith.constant 0 : index
    %c0_4 = arith.constant 0 : index
    %c0_5 = arith.constant 0 : index
    %3 = vector.load %arg4[%c0_3, %c0_4, %c0_5] : memref<3x12x128xf32, #tpu.memory_space<vmem>>, vector<1x12x128xf32>
    %4 = vector.shape_cast %3 : vector<1x12x128xf32> to vector<12x128xf32>
    %cst = arith.constant dense<0.000000e+00> : vector<8x16x128xf32>
    %5 = tpu.matmul %2, %4, %cst {dimension_numbers = #tpu.dot_dimension_numbers<[2], [0], [0, 1], [1], [0, 0, 0, 1, 1, 1], [], []>} : vector<8x16x12xf32>, vector<12x128xf32>, vector<8x16x128xf32> -> vector<8x16x128xf32>
    %c0_6 = arith.constant 0 : index
    %c0_7 = arith.constant 0 : index
    %c0_8 = arith.constant 0 : index
    %6 = vector.load %arg7[%c0_6, %c0_7, %c0_8] : memref<8x16x128xf32, #tpu.memory_space<vmem>>, vector<8x16x128xf32>
    tpu.vector_store %arg7[%c0_6, %c0_7, %c0_8], %5 {strides = array<i32>} : memref<8x16x128xf32, #tpu.memory_space<vmem>>, vector<8x16x128xf32>,
    %7 = vector.extract_strided_slice %1 {offsets = [1, 0, 0], sizes = [8, 16, 12], strides = [1, 1, 1]} : vector<10x16x12xf32> to vector<8x16x12xf32>
    %c1 = arith.constant 1 : index
    %c0_9 = arith.constant 0 : index
    %c0_10 = arith.constant 0 : index
    %8 = vector.load %arg4[%c1, %c0_9, %c0_10] : memref<3x12x128xf32, #tpu.memory_space<vmem>>, vector<1x12x128xf32>
    %9 = vector.shape_cast %8 : vector<1x12x128xf32> to vector<12x128xf32>
    %cst_11 = arith.constant dense<0.000000e+00> : vector<8x16x128xf32>
    %10 = tpu.matmul %7, %9, %cst_11 {dimension_numbers = #tpu.dot_dimension_numbers<[2], [0], [0, 1], [1], [0, 0, 0, 1, 1, 1], [], []>} : vector<8x16x12xf32>, vector<12x128xf32>, vector<8x16x128xf32> -> vector<8x16x128xf32>
    %c0_12 = arith.constant 0 : index
    %c0_13 = arith.constant 0 : index
    %c0_14 = arith.constant 0 : index
    %11 = vector.load %arg7[%c0_12, %c0_13, %c0_14] : memref<8x16x128xf32, #tpu.memory_space<vmem>>, vector<8x16x128xf32>
    %12 = arith.addf %11, %10 : vector<8x16x128xf32>
    %c0_15 = arith.constant 0 : index
    %c0_16 = arith.constant 0 : index
    %c0_17 = arith.constant 0 : index
    %13 = vector.load %arg7[%c0_15, %c0_16, %c0_17] : memref<8x16x128xf32, #tpu.memory_space<vmem>>, vector<8x16x128xf32>
    tpu.vector_store %arg7[%c0_15, %c0_16, %c0_17], %12 {strides = array<i32>} : memref<8x16x128xf32, #tpu.memory_space<vmem>>, vector<8x16x128xf32>,
    %14 = vector.extract_strided_slice %1 {offsets = [2, 0, 0], sizes = [8, 16, 12], strides = [1, 1, 1]} : vector<10x16x12xf32> to vector<8x16x12xf32>
    %c2 = arith.constant 2 : index
    %c0_18 = arith.constant 0 : index
    %c0_19 = arith.constant 0 : index
    %15 = vector.load %arg4[%c2, %c0_18, %c0_19] : memref<3x12x128xf32, #tpu.memory_space<vmem>>, vector<1x12x128xf32>
    %16 = vector.shape_cast %15 : vector<1x12x128xf32> to vector<12x128xf32>
    %cst_20 = arith.constant dense<0.000000e+00> : vector<8x16x128xf32>
    %17 = tpu.matmul %14, %16, %cst_20 {dimension_numbers = #tpu.dot_dimension_numbers<[2], [0], [0, 1], [1], [0, 0, 0, 1, 1, 1], [], []>} : vector<8x16x12xf32>, vector<12x128xf32>, vector<8x16x128xf32> -> vector<8x16x128xf32>
    %c0_21 = arith.constant 0 : index
    %c0_22 = arith.constant 0 : index
    %c0_23 = arith.constant 0 : index
    %18 = vector.load %arg7[%c0_21, %c0_22, %c0_23] : memref<8x16x128xf32, #tpu.memory_space<vmem>>, vector<8x16x128xf32>
    %19 = arith.addf %18, %17 : vector<8x16x128xf32>
    %c0_24 = arith.constant 0 : index
    %c0_25 = arith.constant 0 : index
    %c0_26 = arith.constant 0 : index
    %20 = vector.load %arg7[%c0_24, %c0_25, %c0_26] : memref<8x16x128xf32, #tpu.memory_space<vmem>>, vector<8x16x128xf32>
    tpu.vector_store %arg7[%c0_24, %c0_25, %c0_26], %19 {strides = array<i32>} : memref<8x16x128xf32, #tpu.memory_space<vmem>>, vector<8x16x128xf32>,
    %c0_27 = arith.constant 0 : index
    %c0_28 = arith.constant 0 : index
    %c0_29 = arith.constant 0 : index
    %21 = vector.load %arg7[%c0_27, %c0_28, %c0_29] : memref<8x16x128xf32, #tpu.memory_space<vmem>>, vector<8x16x128xf32>
    %c0_30 = arith.constant 0 : index
    %c0_31 = arith.constant 0 : index
    %22 = vector.load %arg5[%c0_30, %c0_31] : memref<1x128xf32, #tpu.memory_space<vmem>>, vector<1x128xf32>
    %23 = vector.shape_cast %22 : vector<1x128xf32> to vector<128xf32>
    %24 = vector.shape_cast %23 : vector<128xf32> to vector<1x1x128xf32>
    %25 = vector.broadcast %24 : vector<1x1x128xf32> to vector<8x16x128xf32>
    %26 = arith.addf %21, %25 : vector<8x16x128xf32>
    %cst_32 = arith.constant 0.000000e+00 : f32
    %27 = vector.broadcast %cst_32 : f32 to vector<8x16x128xf32>
    %28 = arith.maximumf %26, %27 : vector<8x16x128xf32>
    %c0_33 = arith.constant 0 : index
    %c0_34 = arith.constant 0 : index
    %c0_35 = arith.constant 0 : index
    %c0_36 = arith.constant 0 : index
    %29 = vector.load %arg3[%c0_33, %c0_34, %c0_35, %c0_36] : memref<1x8x16x128xf32, #tpu.memory_space<vmem>>, vector<1x8x16x128xf32>
    %30 = vector.shape_cast %29 : vector<1x8x16x128xf32> to vector<8x16x128xf32>
    %31 = arith.addf %28, %30 : vector<8x16x128xf32>
    %c0_37 = arith.constant 0 : index
    %c0_38 = arith.constant 0 : index
    %c0_39 = arith.constant 0 : index
    %c0_40 = arith.constant 0 : index
    %32 = vector.load %arg6[%c0_37, %c0_38, %c0_39, %c0_40] : memref<1x8x16x128xf32, #tpu.memory_space<vmem>>, vector<1x8x16x128xf32>
    %33 = vector.shape_cast %32 : vector<1x8x16x128xf32> to vector<8x16x128xf32>
    %34 = vector.shape_cast %31 : vector<8x16x128xf32> to vector<1x8x16x128xf32>
    tpu.vector_store %arg6[%c0_37, %c0_38, %c0_39, %c0_40], %34 {strides = array<i32>} : memref<1x8x16x128xf32, #tpu.memory_space<vmem>>, vector<1x8x16x128xf32>,
    return
  }
  func.func @transform_0(%arg0: i32, %arg1: i32) -> (i32, i32, i32, i32) {
    %c2_i32 = arith.constant 2 : i32
    %0 = arith.muli %arg0, %c2_i32 : i32
    %1 = arith.addi %0, %arg1 : i32
    %c0_i32 = arith.constant 0 : i32
    %c0_i32_0 = arith.constant 0 : i32
    %c0_i32_1 = arith.constant 0 : i32
    %c0_i32_2 = arith.constant 0 : i32
    return %1, %c0_i32, %c0_i32_0, %c0_i32_1 : i32, i32, i32, i32
  }
  func.func @transform_1(%arg0: i32, %arg1: i32) -> (i32, i32, i32, i32) {
    %c0_i32 = arith.constant 0 : i32
    %c0_i32_0 = arith.constant 0 : i32
    %c0_i32_1 = arith.constant 0 : i32
    return %arg0, %arg1, %c0_i32, %c0_i32_0 : i32, i32, i32, i32
  }
  func.func @transform_2(%arg0: i32, %arg1: i32) -> (i32, i32, i32) {
    %c0_i32 = arith.constant 0 : i32
    %c0_i32_0 = arith.constant 0 : i32
    %c0_i32_1 = arith.constant 0 : i32
    %c0_i32_2 = arith.constant 0 : i32
    return %c0_i32, %c0_i32_0, %c0_i32_1 : i32, i32, i32
  }
  func.func @transform_3(%arg0: i32, %arg1: i32) -> (i32, i32) {
    %c0_i32 = arith.constant 0 : i32
    %c0_i32_0 = arith.constant 0 : i32
    %c0_i32_1 = arith.constant 0 : i32
    return %c0_i32, %c0_i32_0 : i32, i32
  }
  func.func @transform_4(%arg0: i32, %arg1: i32) -> (i32, i32, i32, i32) {
    %c0_i32 = arith.constant 0 : i32
    %c0_i32_0 = arith.constant 0 : i32
    %c0_i32_1 = arith.constant 0 : i32
    return %arg0, %arg1, %c0_i32, %c0_i32_0 : i32, i32, i32, i32
  }
}

</mosaic_0001>

<llo_original>
// kernel: tpu_custom_call.1
$region0: #{tpu_custom_call.1}
  #allocation0 [shape = 'u32[]', space=smem, size = 0x4, offset = 0x4, fixed_abs, tag = 'smem constant byte address 0x4 - core index']
  #allocation1 [shape = 'u32[144,128]{1,0:T(1,128)}', space=vmem, size = 0x12000, scoped, tag = 'internal scratch']
  #allocation2 [shape = 'f32[8,16,128]{2,1,0:T(8,128)}', space=vmem, size = 0x10000, scoped, tag = 'scratch operand']
  %s0 = inlined_call_operand.vmem [shape: f32[4,10,16,12], index: 0, kind: input, shape index: {}]
  %s1 = inlined_call_operand.vmem [shape: f32[2,16,16,128], index: 1, kind: input, shape index: {}]
  %s2 = inlined_call_operand.vmem [shape: f32[3,12,128], index: 2, kind: input, shape index: {}]
  %s3 = inlined_call_operand.vmem [shape: f32[1,128], index: 3, kind: input, shape index: {}]
  %s4 = inlined_call_operand.hbm [shape: f32[2,16,16,128], index: 4, kind: output, shape index: {}]
  %s5 = sld [smem:[#allocation0]]
  $region49: #{tpu_custom_call.1} parent=0
    _
  %s7 = ssub.s32 1, %s5
  %s8 = scalar_select 0, %s7, %s5
  $region1: #{tpu_custom_call.1} parent=0
    #allocation3 [shape = 'u8[131072]{0}', space=vmem, size = 0x20000, scoped, tag = 'output window, operand 0']
    #allocation4 [shape = 's32[2]{0}', space=sflag, size = 0x8, scoped, tag = 'scoped memory for tpu_custom_call.1']
    %9 = vsyncpa [#allocation4], 0
    %s10 = scalar_lea.sflag [#allocation4], 1
    %11 = vsyncpa %s10, 0
    loop: start=0, step=1, limit=6
    $region2: #{tpu_custom_call.1} parent=1 // loop_pre_header
      _
    $region3: #{tpu_custom_call.1} parent=1 // loop_header
      %s13 = sphi 0, %s17
      %p14 = scmp.ge.s32.totalorder %s13, 6
      %s20 = sphi 0, %s32
      %s21 = sphi 0, %s28
      %s22 = sphi 0, %s20
      %s23 = sphi 0, %s21
      %s24 = sphi 0, %s22
      %s25 = sphi 0, %s23
      %s39 = sphi 0, %s41
      %s42 = sphi 0, %s39
      %s43 = sphi 0, %s42
      %s59 = sphi 0, %s43
      %s67 = sphi 0, %s69
      %s70 = sphi 0, %s67
      %s71 = sphi 0, %s70
      %s87 = sphi 0, %s71
      %s91 = sphi 0, %s91
      %s93 = sphi 0, %s91
      %s94 = sphi 0, %s93
      %s108 = sphi 0, %s94
      %s112 = sphi 0, %s112
      %s114 = sphi 0, %s112
      %s115 = sphi 0, %s114
      %s129 = sphi 0, %s115
      %s137 = sphi 0, %s139
      %s140 = sphi 0, %s137
      %s141 = sphi 0, %s140
      %s157 = sphi 0, %s141
    $region4: #{tpu_custom_call.1} parent=1 // loop_header_branch
      %16 = sbr.rel (%p14) target = $region8
    $region5: #{tpu_custom_call.1} parent=1 // loop_body
      %s18 = ssub.s32 %s13, 1
      %s19 = ssub.s32 %s13, 2
      %s26 = sadd.s32 1, %s21
      %p27 = scmp.ge.s32.totalorder %s26, 2
      %s28 = scalar_select %p27, 0, %s26
      %s29 = sadd.s32 1, %s20
      %s30 = scalar_select %p27, %s29, %s20
      %p31 = scmp.ge.s32.totalorder %s30, 2
      %s32 = scalar_select %p31, 0, %s30
      %s33 = smul.u32 %s20, 2
      %s34 = sadd.s32 %s33, %s21
      %s35 = smul.u32 %s32, 2
      %s36 = sadd.s32 %s35, %s28
      %s37 = ssub.s32 %s34, %s36
      %p38 = scmp.eq.s32.totalorder %s37, 0
      %s40 = sadd.s32 %s39, 1
      %s41 = scalar_select %p38, %s39, %s40
      %p44 = pneg %p38
      %p45 = scmp.eq.s32.totalorder %s13, 3
      %p46 = por %p44, %p45
      %p47 = scmp.ne.s32.totalorder %s39, %s42
      %p48 = scmp.eq.s32.totalorder %s13, 0
      %p49 = por %p47, %p48
      %p50 = scmp.ne.s32.totalorder %s39, %s42
      %p51 = scmp.eq.s32.totalorder %s18, 3
      %p52 = por %p50, %p51
      %p53 = scmp.ne.s32.totalorder %s42, %s43
      %p54 = scmp.eq.s32.totalorder %s18, 0
      %p55 = por %p53, %p54
      %p56 = scmp.ne.s32.totalorder %s42, %s43
      %p57 = scmp.eq.s32.totalorder %s19, 3
      %p58 = por %p56, %p57
      %p60 = scmp.ne.s32.totalorder %s43, %s59
      %p61 = scmp.eq.s32.totalorder %s19, 0
      %p62 = por %p60, %p61
      %s63 = ssub.s32 %s20, %s32
      %s64 = ssub.s32 %s21, %s28
      %s65 = sor.u32 %s63, %s64
      %p66 = scmp.eq.s32.totalorder %s65, 0
      %s68 = sadd.s32 %s67, 1
      %s69 = scalar_select %p66, %s67, %s68
      %p72 = pneg %p66
      %p73 = scmp.eq.s32.totalorder %s13, 3
      %p74 = por %p72, %p73
      %p75 = scmp.ne.s32.totalorder %s67, %s70
      %p76 = scmp.eq.s32.totalorder %s13, 0
      %p77 = por %p75, %p76
      %p78 = scmp.ne.s32.totalorder %s67, %s70
      %p79 = scmp.eq.s32.totalorder %s18, 3
      %p80 = por %p78, %p79
      %p81 = scmp.ne.s32.totalorder %s70, %s71
      %p82 = scmp.eq.s32.totalorder %s18, 0
      %p83 = por %p81, %p82
      %p84 = scmp.ne.s32.totalorder %s70, %s71
      %p85 = scmp.eq.s32.totalorder %s19, 3
      %p86 = por %p84, %p85
      %p88 = scmp.ne.s32.totalorder %s71, %s87
      %p89 = scmp.eq.s32.totalorder %s19, 0
      %p90 = por %p88, %p89
      %s92 = sadd.s32 %s91, 1
      %p95 = scmp.eq.s32.totalorder %s13, 3
      %p96 = scmp.ne.s32.totalorder %s91, %s93
      %p97 = scmp.eq.s32.totalorder %s13, 0
      %p98 = por %p96, %p97
      %p99 = scmp.ne.s32.totalorder %s91, %s93
      %p100 = scmp.eq.s32.totalorder %s18, 3
      %p101 = por %p99, %p100
      %p102 = scmp.ne.s32.totalorder %s93, %s94
      %p103 = scmp.eq.s32.totalorder %s18, 0
      %p104 = por %p102, %p103
      %p105 = scmp.ne.s32.totalorder %s93, %s94
      %p106 = scmp.eq.s32.totalorder %s19, 3
      %p107 = por %p105, %p106
      %p109 = scmp.ne.s32.totalorder %s94, %s108
      %p110 = scmp.eq.s32.totalorder %s19, 0
      %p111 = por %p109, %p110
      %s113 = sadd.s32 %s112, 1
      %p116 = scmp.eq.s32.totalorder %s13, 3
      %p117 = scmp.ne.s32.totalorder %s112, %s114
      %p118 = scmp.eq.s32.totalorder %s13, 0
      %p119 = por %p117, %p118
      %p120 = scmp.ne.s32.totalorder %s112, %s114
      %p121 = scmp.eq.s32.totalorder %s18, 3
      %p122 = por %p120, %p121
      %p123 = scmp.ne.s32.totalorder %s114, %s115
      %p124 = scmp.eq.s32.totalorder %s18, 0
      %p125 = por %p123, %p124
      %p126 = scmp.ne.s32.totalorder %s114, %s115
      %p127 = scmp.eq.s32.totalorder %s19, 3
      %p128 = por %p126, %p127
      %p130 = scmp.ne.s32.totalorder %s115, %s129
      %p131 = scmp.eq.s32.totalorder %s19, 0
      %p132 = por %p130, %p131
      %s133 = ssub.s32 %s20, %s32
      %s134 = ssub.s32 %s21, %s28
      %s135 = sor.u32 %s133, %s134
      %p136 = scmp.eq.s32.totalorder %s135, 0
      %s138 = sadd.s32 %s137, 1
      %s139 = scalar_select %p136, %s137, %s138
      %p142 = pneg %p136
      %p143 = scmp.eq.s32.totalorder %s13, 3
      %p144 = por %p142, %p143
      %p145 = scmp.ne.s32.totalorder %s137, %s140
      %p146 = scmp.eq.s32.totalorder %s13, 0
      %p147 = por %p145, %p146
      %p148 = scmp.ne.s32.totalorder %s137, %s140
      %p149 = scmp.eq.s32.totalorder %s18, 3
      %p150 = por %p148, %p149
      %p151 = scmp.ne.s32.totalorder %s140, %s141
      %p152 = scmp.eq.s32.totalorder %s18, 0
      %p153 = por %p151, %p152
      %p154 = scmp.ne.s32.totalorder %s140, %s141
      %p155 = scmp.eq.s32.totalorder %s19, 3
      %p156 = por %p154, %p155
      %p158 = scmp.ne.s32.totalorder %s141, %s157
      %p159 = scmp.eq.s32.totalorder %s19, 0
      %p160 = por %p158, %p159
      %p161 = scmp.le.s32.totalorder 1, %s13
      %p162 = scmp.lt.s32.totalorder %s13, 5
      %p163 = pnand %p161, %p162
      %p164 = pneg %p163
      // Predicated region
      $region9: #{tpu_custom_call.1} parent=5 // pred_check
        _
      $region10: #{tpu_custom_call.1} parent=5 // pred_check_branch
        %166 = sbr.rel (%p163) target = $region12
      $region11: #{tpu_custom_call.1} parent=5 // pred_region
        %s167 = ssub.s32 %s13, 1
        // Predicated region
        $region13: #{tpu_custom_call.1} parent=11 // pred_check
          %p168 = pneg %p104
        $region14: #{tpu_custom_call.1} parent=11 // pred_check_branch
          %170 = sbr.rel (%p168) target = $region16
        $region15: #{tpu_custom_call.1} parent=11 // pred_region
          _
        $region16: #{tpu_custom_call.1} parent=11 // pred_fallthru
          _
        // Predicated region
        $region17: #{tpu_custom_call.1} parent=11 // pred_check
          %p171 = pneg %p125
        $region18: #{tpu_custom_call.1} parent=11 // pred_check_branch
          %173 = sbr.rel (%p171) target = $region20
        $region19: #{tpu_custom_call.1} parent=11 // pred_region
          _
        $region20: #{tpu_custom_call.1} parent=11 // pred_fallthru
          _
      $region12: #{tpu_custom_call.1} parent=5 // pred_fallthru
        _
      %p174 = scmp.lt.s32.totalorder %s13, 4
      // Predicated region
      $region21: #{tpu_custom_call.1} parent=5 // pred_check
        %p175 = pneg %p174
      $region22: #{tpu_custom_call.1} parent=5 // pred_check_branch
        %177 = sbr.rel (%p175) target = $region24
      $region23: #{tpu_custom_call.1} parent=5 // pred_region
        // Predicated region
        $region25: #{tpu_custom_call.1} parent=23 // pred_check
          %p178 = pneg %p49
        $region26: #{tpu_custom_call.1} parent=23 // pred_check_branch
          %180 = sbr.rel (%p178) target = $region28
        $region27: #{tpu_custom_call.1} parent=23 // pred_region
          %s181 = smul.u32 %s20, 2
          %s182 = sadd.s32 %s181, %s21
          %p183 = scmp.lt.s32.totalorder %s182, 3
          %s184 = scalar_select %p183, %s182, 3
          %s185 = smul.addr %s184, 20
          %s186 = smul.addr %s185, 8
          %s187 = scalar_lea.vmem %s0, %s186
          %s188 = smul.u32 %s20, 2
          %s189 = sadd.s32 %s188, %s21
        $region28: #{tpu_custom_call.1} parent=23 // pred_fallthru
          _
        // Predicated region
        $region29: #{tpu_custom_call.1} parent=23 // pred_check
          %p190 = pneg %p77
        $region30: #{tpu_custom_call.1} parent=23 // pred_check_branch
          %192 = sbr.rel (%p190) target = $region32
        $region31: #{tpu_custom_call.1} parent=23 // pred_region
          %s193 = smul.u32 8, %s21
          %p194 = scmp.lt.s32.totalorder %s20, 1
          %s195 = scalar_select %p194, %s20, 1
          %p196 = scmp.lt.s32.totalorder %s193, 15
          %s197 = scalar_select %p196, %s193, 15
          %s198 = smul.addr %s197, 2
          %s199 = smul.addr %s195, 32
          %s200 = sadd.s32 %s198, %s199
          %s201 = smul.addr %s200, 8
          %s202 = scalar_lea.vmem %s1, %s201
          %s203 = smul.u32 8, %s21
        $region32: #{tpu_custom_call.1} parent=23 // pred_fallthru
          _
      $region24: #{tpu_custom_call.1} parent=5 // pred_fallthru
        _
      %p204 = scmp.le.s32.totalorder 1, %s13
      %p205 = scmp.lt.s32.totalorder %s13, 5
      %p206 = pnand %p204, %p205
      %p207 = pneg %p206
      // Predicated region
      $region33: #{tpu_custom_call.1} parent=5 // pred_check
        _
      $region34: #{tpu_custom_call.1} parent=5 // pred_check_branch
        %209 = sbr.rel (%p206) target = $region36
      $region35: #{tpu_custom_call.1} parent=5 // pred_region
        %s210 = ssub.s32 %s13, 1
        %s211 = smul.u32 %s22, 2
        %s212 = sadd.s32 %s211, %s23
        %p213 = scmp.lt.s32.totalorder %s212, 3
        %s214 = scalar_select %p213, %s212, 3
        %s215 = smul.addr %s214, 20
        %s216 = smul.addr %s215, 8
        %s217 = scalar_lea.vmem %s0, %s216
        %p218 = pneg %p55
        %p219 = pneg %p52
        %s220 = smul.u32 8, %s23
        %p221 = scmp.lt.s32.totalorder %s22, 1
        %s222 = scalar_select %p221, %s22, 1
        %p223 = scmp.lt.s32.totalorder %s220, 15
        %s224 = scalar_select %p223, %s220, 15
        %s225 = smul.addr %s224, 2
        %s226 = smul.addr %s222, 32
        %s227 = sadd.s32 %s225, %s226
        %s228 = smul.addr %s227, 8
        %s229 = scalar_lea.vmem %s1, %s228
        %p230 = pneg %p83
        %p231 = pneg %p80
        %p232 = pneg %p104
        %p233 = pneg %p101
        %p234 = pneg %p125
        %p235 = pneg %p122
        %p236 = pneg %p153
        %p237 = pneg %p150
        %s238 = sand.u32 %s140, 1
        %s239 = scalar_lea.sflag [#allocation4], %s238
        %s240 = sand.u32 %s140, 1
        %s241 = smul.addr %s240, 128
        %s242 = scalar_lea.vmem [#allocation3], %s241
        %s243 = smul.u32 %s22, 2
        %s244 = sadd.s32 %s243, %s23
        %p245 = scmp.lt.s32.totalorder %s244, 3
        %s246 = scalar_select %p245, %s244, 3
        %s247 = smul.addr %s246, 20
        %s248 = smul.addr %s247, 8
        %s249 = scalar_lea.vmem %s0, %s248
        %s250 = smul.u32 %s22, 2
        %s251 = sadd.s32 %s250, %s23
        %s252 = smul.u32 8, %s23
        %p253 = scmp.lt.s32.totalorder %s22, 1
        %s254 = scalar_select %p253, %s22, 1
        %p255 = scmp.lt.s32.totalorder %s252, 15
        %s256 = scalar_select %p255, %s252, 15
        %s257 = smul.addr %s256, 2
        %s258 = smul.addr %s254, 32
        %s259 = sadd.s32 %s257, %s258
        %s260 = smul.addr %s259, 8
        %s261 = scalar_lea.vmem %s1, %s260
        %s262 = smul.u32 8, %s23
        %s263 = smul.u32 8, %s23
        %v264 = vld [vmem:[%s249] sm:$0xff]
        %v265 = vld [vmem:[%s249 + $0x8] sm:$0xff]
        %v266 = vld [vmem:[%s249 + $0x10] sm:$0xff]
        %v267 = vld [vmem:[%s249 + $0x18] sm:$0xff]
        %v268 = vld [vmem:[%s249 + $0x20] sm:$0xff]
        %v269 = vld [vmem:[%s249 + $0x28] sm:$0xff]
        %v270 = vld [vmem:[%s249 + $0x30] sm:$0xff]
        %v271 = vld [vmem:[%s249 + $0x38] sm:$0xff]
        %v272 = vld [vmem:[%s249 + $0x40] sm:$0xff]
        %v273 = vld [vmem:[%s249 + $0x48] sm:$0xff]
        %v274 = vld [vmem:[%s249 + $0x50] sm:$0xff]
        %v275 = vld [vmem:[%s249 + $0x58] sm:$0xff]
        %v276 = vld [vmem:[%s249 + $0x60] sm:$0xff]
        %v277 = vld [vmem:[%s249 + $0x68] sm:$0xff]
        %v278 = vld [vmem:[%s249 + $0x70] sm:$0xff]
        %v279 = vld [vmem:[%s249 + $0x78] sm:$0xff]
        %v280 = vld [vmem:[%s249 + $0x80] sm:$0xff]
        %v281 = vld [vmem:[%s249 + $0x88] sm:$0xff]
        %v282 = vld [vmem:[%s249 + $0x90] sm:$0xff]
        %v283 = vld [vmem:[%s249 + $0x98] sm:$0xff]
        %v284 = vld [vmem:[%s2] sm:$0xff]
        %v285 = vld [vmem:[%s2 + $0x8] sm:$0xf]
        %vm286 = vcmask 97280
        %v288 = vsel %vm286, %v264, 0
        %v291 = vsel %vm286, %v265, 0
        %v294 = vsel %vm286, %v266, 0
        %v297 = vsel %vm286, %v267, 0
        %v300 = vsel %vm286, %v268, 0
        %v303 = vsel %vm286, %v269, 0
        %v306 = vsel %vm286, %v270, 0
        %v309 = vsel %vm286, %v271, 0
        %v312 = vsel %vm286, %v272, 0
        %v315 = vsel %vm286, %v273, 0
        %v318 = vsel %vm286, %v274, 0
        %v321 = vsel %vm286, %v275, 0
        %v324 = vsel %vm286, %v276, 0
        %v327 = vsel %vm286, %v277, 0
        %v330 = vsel %vm286, %v278, 0
        %v333 = vsel %vm286, %v279, 0
        %vm335 = vcmask 1043456
        %v337 = vsel %vm335, %v285, 0
        %339 = vmatprep.subr.mxu0 0.0
        %340 = vmatpush1.msra.mxu0 0.0
        %341 = vmatprep.subr.mxu0 0.0
        %342 = vmatpush1.msra.mxu0 0.0
        %343 = vmatprep.subr.mxu0 0.0
        %344 = vmatpush1.msra.mxu0 0.0
        %345 = vmatprep.subr.mxu0 0.0
        %346 = vmatpush1.msra.mxu0 0.0
        %347 = vmatprep.subr.mxu0 0.0
        %348 = vmatpush1.msra.mxu0 0.0
        %349 = vmatprep.subr.mxu0 0.0
        %350 = vmatpush1.msra.mxu0 0.0
        %351 = vmatprep.subr.mxu0 0.0
        %352 = vmatpush1.msra.mxu0 0.0
        %353 = vmatprep.subr.mxu0 0.0
        %354 = vmatpush1.msra.mxu0 0.0
        %355 = vmatprep.subr.mxu0 0.0
        %356 = vmatpush1.msra.mxu0 0.0
        %357 = vmatprep.subr.mxu0 0.0
        %358 = vmatpush1.msra.mxu0 0.0
        %359 = vmatprep.subr.mxu0 0.0
        %360 = vmatpush1.msra.mxu0 0.0
        %361 = vmatprep.subr.mxu0 0.0
        %362 = vmatpush1.msra.mxu0 0.0
        %363 = vmatprep.subr.mxu0 0.0
        %364 = vmatpush1.msra.mxu0 0.0
        %365 = vmatprep.subr.mxu0 0.0
        %366 = vmatpush1.msra.mxu0 0.0
        %367 = vmatprep.subr.mxu0 0.0
        %368 = vmatpush1.msra.mxu0 %v337
        %369 = vmatprep.subr.mxu0 0.0
        %370 = vmatpush1.msra.mxu0 %v284
        %371 = vmatprep.subr.mxu0 0.0
        %372 = vmatpush2.msra.mxu0 0.0
        %373 = vmatprep.subr.mxu0 0.0
        %374 = vmatpush2.msra.mxu0 0.0
        %375 = vmatprep.subr.mxu0 0.0
        %376 = vmatpush2.msra.mxu0 0.0
        %377 = vmatprep.subr.mxu0 0.0
        %378 = vmatpush2.msra.mxu0 0.0
        %379 = vmatprep.subr.mxu0 0.0
        %380 = vmatpush2.msra.mxu0 0.0
        %381 = vmatprep.subr.mxu0 0.0
        %382 = vmatpush2.msra.mxu0 0.0
        %383 = vmatprep.subr.mxu0 0.0
        %384 = vmatpush2.msra.mxu0 0.0
        %385 = vmatprep.subr.mxu0 0.0
        %386 = vmatpush2.msra.mxu0 0.0
        %387 = vmatprep.subr.mxu0 0.0
        %388 = vmatpush2.msra.mxu0 0.0
        %389 = vmatprep.subr.mxu0 0.0
        %390 = vmatpush2.msra.mxu0 0.0
        %391 = vmatprep.subr.mxu0 0.0
        %392 = vmatpush2.msra.mxu0 0.0
        %393 = vmatprep.subr.mxu0 0.0
        %394 = vmatpush2.msra.mxu0 0.0
        %395 = vmatprep.subr.mxu0 0.0
        %396 = vmatpush2.msra.mxu0 0.0
        %397 = vmatprep.subr.mxu0 0.0
        %398 = vmatpush2.msra.mxu0 0.0
        %399 = vmatprep.subr.mxu0 0.0
        %400 = vmatpush2.msra.mxu0 0.0
        %401 = vmatprep.subr.mxu0 0.0
        %402 = vmatpush2.msra.mxu0 0.0
        %403 = vmatprep.mubr.f32.mxu0 0.0
        %404 = vmatmul.mubr.f32.gmra.mxu0 %v288
        %v405 = vpop.f32.mrf.mxu0
        %v406 = vadd.f32 0.0, %v405
        %v407 = vpop.f32.mrf.mxu0
        %408 = vmatprep.mubr.f32.mxu0 0.0
        %409 = vmatmul.mubr.f32.gmra.mxu0 %v291
        %v410 = vpop.f32.mrf.mxu0
        %v411 = vadd.f32 0.0, %v410
        %v412 = vpop.f32.mrf.mxu0
        %413 = vmatprep.mubr.f32.mxu0 0.0
        %414 = vmatmul.mubr.f32.gmra.mxu0 %v294
        %v415 = vpop.f32.mrf.mxu0
        %v416 = vadd.f32 0.0, %v415
        %v417 = vpop.f32.mrf.mxu0
        %418 = vmatprep.mubr.f32.mxu0 0.0
        %419 = vmatmul.mubr.f32.gmra.mxu0 %v297
        %v420 = vpop.f32.mrf.mxu0
        %v421 = vadd.f32 0.0, %v420
        %v422 = vpop.f32.mrf.mxu0
        %423 = vmatprep.mubr.f32.mxu0 0.0
        %424 = vmatmul.mubr.f32.gmra.mxu0 %v300
        %v425 = vpop.f32.mrf.mxu0
        %v426 = vadd.f32 0.0, %v425
        %v427 = vpop.f32.mrf.mxu0
        %428 = vmatprep.mubr.f32.mxu0 0.0
        %429 = vmatmul.mubr.f32.gmra.mxu0 %v303
        %v430 = vpop.f32.mrf.mxu0
        %v431 = vadd.f32 0.0, %v430
        %v432 = vpop.f32.mrf.mxu0
        %433 = vmatprep.mubr.f32.mxu0 0.0
        %434 = vmatmul.mubr.f32.gmra.mxu0 %v306
        %v435 = vpop.f32.mrf.mxu0
        %v436 = vadd.f32 0.0, %v435
        %v437 = vpop.f32.mrf.mxu0
        %438 = vmatprep.mubr.f32.mxu0 0.0
        %439 = vmatmul.mubr.f32.gmra.mxu0 %v309
        %v440 = vpop.f32.mrf.mxu0
        %v441 = vadd.f32 0.0, %v440
        %v442 = vpop.f32.mrf.mxu0
        %443 = vmatprep.mubr.f32.mxu0 0.0
        %444 = vmatmul.mubr.f32.gmra.mxu0 %v312
        %v445 = vpop.f32.mrf.mxu0
        %v446 = vadd.f32 0.0, %v445
        %v447 = vpop.f32.mrf.mxu0
        %448 = vmatprep.mubr.f32.mxu0 0.0
        %449 = vmatmul.mubr.f32.gmra.mxu0 %v315
        %v450 = vpop.f32.mrf.mxu0
        %v451 = vadd.f32 0.0, %v450
        %v452 = vpop.f32.mrf.mxu0
        %453 = vmatprep.mubr.f32.mxu0 0.0
        %454 = vmatmul.mubr.f32.gmra.mxu0 %v318
        %v455 = vpop.f32.mrf.mxu0
        %v456 = vadd.f32 0.0, %v455
        %v457 = vpop.f32.mrf.mxu0
        %458 = vmatprep.mubr.f32.mxu0 0.0
        %459 = vmatmul.mubr.f32.gmra.mxu0 %v321
        %v460 = vpop.f32.mrf.mxu0
        %v461 = vadd.f32 0.0, %v460
        %v462 = vpop.f32.mrf.mxu0
        %463 = vmatprep.mubr.f32.mxu0 0.0
        %464 = vmatmul.mubr.f32.gmra.mxu0 %v324
        %v465 = vpop.f32.mrf.mxu0
        %v466 = vadd.f32 0.0, %v465
        %v467 = vpop.f32.mrf.mxu0
        %468 = vmatprep.mubr.f32.mxu0 0.0
        %469 = vmatmul.mubr.f32.gmra.mxu0 %v327
        %v470 = vpop.f32.mrf.mxu0
        %v471 = vadd.f32 0.0, %v470
        %v472 = vpop.f32.mrf.mxu0
        %473 = vmatprep.mubr.f32.mxu0 0.0
        %474 = vmatmul.mubr.f32.gmra.mxu0 %v330
        %v475 = vpop.f32.mrf.mxu0
        %v476 = vadd.f32 0.0, %v475
        %v477 = vpop.f32.mrf.mxu0
        %478 = vmatprep.mubr.f32.mxu0 0.0
        %479 = vmatmul.mubr.f32.gmra.mxu0 %v333
        %v480 = vpop.f32.mrf.mxu0
        %v481 = vadd.f32 0.0, %v480
        %v482 = vpop.f32.mrf.mxu0
        %483 = vdwg.mxu0
        %484 = vst [vmem:[#allocation2] sm:$0xff] %v406
        %485 = vst [vmem:[#allocation2 + $0x8] sm:$0xff] %v411
        %486 = vst [vmem:[#allocation2 + $0x10] sm:$0xff] %v416
        %487 = vst [vmem:[#allocation2 + $0x18] sm:$0xff] %v421
        %488 = vst [vmem:[#allocation2 + $0x20] sm:$0xff] %v426
        %489 = vst [vmem:[#allocation2 + $0x28] sm:$0xff] %v431
        %490 = vst [vmem:[#allocation2 + $0x30] sm:$0xff] %v436
        %491 = vst [vmem:[#allocation2 + $0x38] sm:$0xff] %v441
        %492 = vst [vmem:[#allocation2 + $0x40] sm:$0xff] %v446
        %493 = vst [vmem:[#allocation2 + $0x48] sm:$0xff] %v451
        %494 = vst [vmem:[#allocation2 + $0x50] sm:$0xff] %v456
        %495 = vst [vmem:[#allocation2 + $0x58] sm:$0xff] %v461
        %496 = vst [vmem:[#allocation2 + $0x60] sm:$0xff] %v466
        %497 = vst [vmem:[#allocation2 + $0x68] sm:$0xff] %v471
        %498 = vst [vmem:[#allocation2 + $0x70] sm:$0xff] %v476
        %499 = vst [vmem:[#allocation2 + $0x78] sm:$0xff] %v481
        %s500 = scalar_lea.vmem %s2, 16
        %v501 = vld [vmem:[%s500] sm:$0xff]
        %v502 = vld [vmem:[%s500 + $0x8] sm:$0xf]
        %v504 = vsel %vm286, %v280, 0
        %v507 = vsel %vm286, %v281, 0
        %v510 = vsel %vm335, %v502, 0
        %512 = vmatprep.subr.mxu0 0.0
        %513 = vmatpush1.msra.mxu0 0.0
        %514 = vmatprep.subr.mxu0 0.0
        %515 = vmatpush1.msra.mxu0 0.0
        %516 = vmatprep.subr.mxu0 0.0
        %517 = vmatpush1.msra.mxu0 0.0
        %518 = vmatprep.subr.mxu0 0.0
        %519 = vmatpush1.msra.mxu0 0.0
        %520 = vmatprep.subr.mxu0 0.0
        %521 = vmatpush1.msra.mxu0 0.0
        %522 = vmatprep.subr.mxu0 0.0
        %523 = vmatpush1.msra.mxu0 0.0
        %524 = vmatprep.subr.mxu0 0.0
        %525 = vmatpush1.msra.mxu0 0.0
        %526 = vmatprep.subr.mxu0 0.0
        %527 = vmatpush1.msra.mxu0 0.0
        %528 = vmatprep.subr.mxu0 0.0
        %529 = vmatpush1.msra.mxu0 0.0
        %530 = vmatprep.subr.mxu0 0.0
        %531 = vmatpush1.msra.mxu0 0.0
        %532 = vmatprep.subr.mxu0 0.0
        %533 = vmatpush1.msra.mxu0 0.0
        %534 = vmatprep.subr.mxu0 0.0
        %535 = vmatpush1.msra.mxu0 0.0
        %536 = vmatprep.subr.mxu0 0.0
        %537 = vmatpush1.msra.mxu0 0.0
        %538 = vmatprep.subr.mxu0 0.0
        %539 = vmatpush1.msra.mxu0 0.0
        %540 = vmatprep.subr.mxu0 0.0
        %541 = vmatpush1.msra.mxu0 %v510
        %542 = vmatprep.subr.mxu0 0.0
        %543 = vmatpush1.msra.mxu0 %v501
        %544 = vmatprep.subr.mxu0 0.0
        %545 = vmatpush2.msra.mxu0 0.0
        %546 = vmatprep.subr.mxu0 0.0
        %547 = vmatpush2.msra.mxu0 0.0
        %548 = vmatprep.subr.mxu0 0.0
        %549 = vmatpush2.msra.mxu0 0.0
        %550 = vmatprep.subr.mxu0 0.0
        %551 = vmatpush2.msra.mxu0 0.0
        %552 = vmatprep.subr.mxu0 0.0
        %553 = vmatpush2.msra.mxu0 0.0
        %554 = vmatprep.subr.mxu0 0.0
        %555 = vmatpush2.msra.mxu0 0.0
        %556 = vmatprep.subr.mxu0 0.0
        %557 = vmatpush2.msra.mxu0 0.0
        %558 = vmatprep.subr.mxu0 0.0
        %559 = vmatpush2.msra.mxu0 0.0
        %560 = vmatprep.subr.mxu0 0.0
        %561 = vmatpush2.msra.mxu0 0.0
        %562 = vmatprep.subr.mxu0 0.0
        %563 = vmatpush2.msra.mxu0 0.0
        %564 = vmatprep.subr.mxu0 0.0
        %565 = vmatpush2.msra.mxu0 0.0
        %566 = vmatprep.subr.mxu0 0.0
        %567 = vmatpush2.msra.mxu0 0.0
        %568 = vmatprep.subr.mxu0 0.0
        %569 = vmatpush2.msra.mxu0 0.0
        %570 = vmatprep.subr.mxu0 0.0
        %571 = vmatpush2.msra.mxu0 0.0
        %572 = vmatprep.subr.mxu0 0.0
        %573 = vmatpush2.msra.mxu0 0.0
        %574 = vmatprep.subr.mxu0 0.0
        %575 = vmatpush2.msra.mxu0 0.0
        %576 = vmatprep.mubr.f32.mxu0 0.0
        %577 = vmatmul.mubr.f32.gmra.mxu0 %v294
        %v578 = vpop.f32.mrf.mxu0
        %v579 = vadd.f32 0.0, %v578
        %v580 = vpop.f32.mrf.mxu0
        %581 = vmatprep.mubr.f32.mxu0 0.0
        %582 = vmatmul.mubr.f32.gmra.mxu0 %v297
        %v583 = vpop.f32.mrf.mxu0
        %v584 = vadd.f32 0.0, %v583
        %v585 = vpop.f32.mrf.mxu0
        %586 = vmatprep.mubr.f32.mxu0 0.0
        %587 = vmatmul.mubr.f32.gmra.mxu0 %v300
        %v588 = vpop.f32.mrf.mxu0
        %v589 = vadd.f32 0.0, %v588
        %v590 = vpop.f32.mrf.mxu0
        %591 = vmatprep.mubr.f32.mxu0 0.0
        %592 = vmatmul.mubr.f32.gmra.mxu0 %v303
        %v593 = vpop.f32.mrf.mxu0
        %v594 = vadd.f32 0.0, %v593
        %v595 = vpop.f32.mrf.mxu0
        %596 = vmatprep.mubr.f32.mxu0 0.0
        %597 = vmatmul.mubr.f32.gmra.mxu0 %v306
        %v598 = vpop.f32.mrf.mxu0
        %v599 = vadd.f32 0.0, %v598
        %v600 = vpop.f32.mrf.mxu0
        %601 = vmatprep.mubr.f32.mxu0 0.0
        %602 = vmatmul.mubr.f32.gmra.mxu0 %v309
        %v603 = vpop.f32.mrf.mxu0
        %v604 = vadd.f32 0.0, %v603
        %v605 = vpop.f32.mrf.mxu0
        %606 = vmatprep.mubr.f32.mxu0 0.0
        %607 = vmatmul.mubr.f32.gmra.mxu0 %v312
        %v608 = vpop.f32.mrf.mxu0
        %v609 = vadd.f32 0.0, %v608
        %v610 = vpop.f32.mrf.mxu0
        %611 = vmatprep.mubr.f32.mxu0 0.0
        %612 = vmatmul.mubr.f32.gmra.mxu0 %v315
        %v613 = vpop.f32.mrf.mxu0
        %v614 = vadd.f32 0.0, %v613
        %v615 = vpop.f32.mrf.mxu0
        %616 = vmatprep.mubr.f32.mxu0 0.0
        %617 = vmatmul.mubr.f32.gmra.mxu0 %v318
        %v618 = vpop.f32.mrf.mxu0
        %v619 = vadd.f32 0.0, %v618
        %v620 = vpop.f32.mrf.mxu0
        %621 = vmatprep.mubr.f32.mxu0 0.0
        %622 = vmatmul.mubr.f32.gmra.mxu0 %v321
        %v623 = vpop.f32.mrf.mxu0
        %v624 = vadd.f32 0.0, %v623
        %v625 = vpop.f32.mrf.mxu0
        %626 = vmatprep.mubr.f32.mxu0 0.0
        %627 = vmatmul.mubr.f32.gmra.mxu0 %v324
        %v628 = vpop.f32.mrf.mxu0
        %v629 = vadd.f32 0.0, %v628
        %v630 = vpop.f32.mrf.mxu0
        %631 = vmatprep.mubr.f32.mxu0 0.0
        %632 = vmatmul.mubr.f32.gmra.mxu0 %v327
        %v633 = vpop.f32.mrf.mxu0
        %v634 = vadd.f32 0.0, %v633
        %v635 = vpop.f32.mrf.mxu0
        %636 = vmatprep.mubr.f32.mxu0 0.0
        %637 = vmatmul.mubr.f32.gmra.mxu0 %v330
        %v638 = vpop.f32.mrf.mxu0
        %v639 = vadd.f32 0.0, %v638
        %v640 = vpop.f32.mrf.mxu0
        %641 = vmatprep.mubr.f32.mxu0 0.0
        %642 = vmatmul.mubr.f32.gmra.mxu0 %v333
        %v643 = vpop.f32.mrf.mxu0
        %v644 = vadd.f32 0.0, %v643
        %v645 = vpop.f32.mrf.mxu0
        %646 = vmatprep.mubr.f32.mxu0 0.0
        %647 = vmatmul.mubr.f32.gmra.mxu0 %v504
        %v648 = vpop.f32.mrf.mxu0
        %v649 = vadd.f32 0.0, %v648
        %v650 = vpop.f32.mrf.mxu0
        %651 = vmatprep.mubr.f32.mxu0 0.0
        %652 = vmatmul.mubr.f32.gmra.mxu0 %v507
        %v653 = vpop.f32.mrf.mxu0
        %v654 = vadd.f32 0.0, %v653
        %v655 = vpop.f32.mrf.mxu0
        %656 = vdwg.mxu0
        %v657 = vld [vmem:[#allocation2] sm:$0xff]
        %v658 = vld [vmem:[#allocation2 + $0x8] sm:$0xff]
        %v659 = vld [vmem:[#allocation2 + $0x10] sm:$0xff]
        %v660 = vld [vmem:[#allocation2 + $0x18] sm:$0xff]
        %v661 = vld [vmem:[#allocation2 + $0x20] sm:$0xff]
        %v662 = vld [vmem:[#allocation2 + $0x28] sm:$0xff]
        %v663 = vld [vmem:[#allocation2 + $0x30] sm:$0xff]
        %v664 = vld [vmem:[#allocation2 + $0x38] sm:$0xff]
        %v665 = vld [vmem:[#allocation2 + $0x40] sm:$0xff]
        %v666 = vld [vmem:[#allocation2 + $0x48] sm:$0xff]
        %v667 = vld [vmem:[#allocation2 + $0x50] sm:$0xff]
        %v668 = vld [vmem:[#allocation2 + $0x58] sm:$0xff]
        %v669 = vld [vmem:[#allocation2 + $0x60] sm:$0xff]
        %v670 = vld [vmem:[#allocation2 + $0x68] sm:$0xff]
        %v671 = vld [vmem:[#allocation2 + $0x70] sm:$0xff]
        %v672 = vld [vmem:[#allocation2 + $0x78] sm:$0xff]
        %v673 = vadd.f32 %v657, %v579
        %v674 = vadd.f32 %v658, %v584
        %v675 = vadd.f32 %v659, %v589
        %v676 = vadd.f32 %v660, %v594
        %v677 = vadd.f32 %v661, %v599
        %v678 = vadd.f32 %v662, %v604
        %v679 = vadd.f32 %v663, %v609
        %v680 = vadd.f32 %v664, %v614
        %v681 = vadd.f32 %v665, %v619
        %v682 = vadd.f32 %v666, %v624
        %v683 = vadd.f32 %v667, %v629
        %v684 = vadd.f32 %v668, %v634
        %v685 = vadd.f32 %v669, %v639
        %v686 = vadd.f32 %v670, %v644
        %v687 = vadd.f32 %v671, %v649
        %v688 = vadd.f32 %v672, %v654
        %689 = vst [vmem:[#allocation2] sm:$0xff] %v673
        %690 = vst [vmem:[#allocation2 + $0x8] sm:$0xff] %v674
        %691 = vst [vmem:[#allocation2 + $0x10] sm:$0xff] %v675
        %692 = vst [vmem:[#allocation2 + $0x18] sm:$0xff] %v676
        %693 = vst [vmem:[#allocation2 + $0x20] sm:$0xff] %v677
        %694 = vst [vmem:[#allocation2 + $0x28] sm:$0xff] %v678
        %695 = vst [vmem:[#allocation2 + $0x30] sm:$0xff] %v679
        %696 = vst [vmem:[#allocation2 + $0x38] sm:$0xff] %v680
        %697 = vst [vmem:[#allocation2 + $0x40] sm:$0xff] %v681
        %698 = vst [vmem:[#allocation2 + $0x48] sm:$0xff] %v682
        %699 = vst [vmem:[#allocation2 + $0x50] sm:$0xff] %v683
        %700 = vst [vmem:[#allocation2 + $0x58] sm:$0xff] %v684
        %701 = vst [vmem:[#allocation2 + $0x60] sm:$0xff] %v685
        %702 = vst [vmem:[#allocation2 + $0x68] sm:$0xff] %v686
        %703 = vst [vmem:[#allocation2 + $0x70] sm:$0xff] %v687
        %704 = vst [vmem:[#allocation2 + $0x78] sm:$0xff] %v688
        %s705 = scalar_lea.vmem %s2, 32
        %v706 = vld [vmem:[%s705] sm:$0xff]
        %v707 = vld [vmem:[%s705 + $0x8] sm:$0xf]
        %v709 = vsel %vm286, %v282, 0
        %v712 = vsel %vm286, %v283, 0
        %v715 = vsel %vm335, %v707, 0
        %717 = vmatprep.subr.mxu0 0.0
        %718 = vmatpush1.msra.mxu0 0.0
        %719 = vmatprep.subr.mxu0 0.0
        %720 = vmatpush1.msra.mxu0 0.0
        %721 = vmatprep.subr.mxu0 0.0
        %722 = vmatpush1.msra.mxu0 0.0
        %723 = vmatprep.subr.mxu0 0.0
        %724 = vmatpush1.msra.mxu0 0.0
        %725 = vmatprep.subr.mxu0 0.0
        %726 = vmatpush1.msra.mxu0 0.0
        %727 = vmatprep.subr.mxu0 0.0
        %728 = vmatpush1.msra.mxu0 0.0
        %729 = vmatprep.subr.mxu0 0.0
        %730 = vmatpush1.msra.mxu0 0.0
        %731 = vmatprep.subr.mxu0 0.0
        %732 = vmatpush1.msra.mxu0 0.0
        %733 = vmatprep.subr.mxu0 0.0
        %734 = vmatpush1.msra.mxu0 0.0
        %735 = vmatprep.subr.mxu0 0.0
        %736 = vmatpush1.msra.mxu0 0.0
        %737 = vmatprep.subr.mxu0 0.0
        %738 = vmatpush1.msra.mxu0 0.0
        %739 = vmatprep.subr.mxu0 0.0
        %740 = vmatpush1.msra.mxu0 0.0
        %741 = vmatprep.subr.mxu0 0.0
        %742 = vmatpush1.msra.mxu0 0.0
        %743 = vmatprep.subr.mxu0 0.0
        %744 = vmatpush1.msra.mxu0 0.0
        %745 = vmatprep.subr.mxu0 0.0
        %746 = vmatpush1.msra.mxu0 %v715
        %747 = vmatprep.subr.mxu0 0.0
        %748 = vmatpush1.msra.mxu0 %v706
        %749 = vmatprep.subr.mxu0 0.0
        %750 = vmatpush2.msra.mxu0 0.0
        %751 = vmatprep.subr.mxu0 0.0
        %752 = vmatpush2.msra.mxu0 0.0
        %753 = vmatprep.subr.mxu0 0.0
        %754 = vmatpush2.msra.mxu0 0.0
        %755 = vmatprep.subr.mxu0 0.0
        %756 = vmatpush2.msra.mxu0 0.0
        %757 = vmatprep.subr.mxu0 0.0
        %758 = vmatpush2.msra.mxu0 0.0
        %759 = vmatprep.subr.mxu0 0.0
        %760 = vmatpush2.msra.mxu0 0.0
        %761 = vmatprep.subr.mxu0 0.0
        %762 = vmatpush2.msra.mxu0 0.0
        %763 = vmatprep.subr.mxu0 0.0
        %764 = vmatpush2.msra.mxu0 0.0
        %765 = vmatprep.subr.mxu0 0.0
        %766 = vmatpush2.msra.mxu0 0.0
        %767 = vmatprep.subr.mxu0 0.0
        %768 = vmatpush2.msra.mxu0 0.0
        %769 = vmatprep.subr.mxu0 0.0
        %770 = vmatpush2.msra.mxu0 0.0
        %771 = vmatprep.subr.mxu0 0.0
        %772 = vmatpush2.msra.mxu0 0.0
        %773 = vmatprep.subr.mxu0 0.0
        %774 = vmatpush2.msra.mxu0 0.0
        %775 = vmatprep.subr.mxu0 0.0
        %776 = vmatpush2.msra.mxu0 0.0
        %777 = vmatprep.subr.mxu0 0.0
        %778 = vmatpush2.msra.mxu0 0.0
        %779 = vmatprep.subr.mxu0 0.0
        %780 = vmatpush2.msra.mxu0 0.0
        %781 = vmatprep.mubr.f32.mxu0 0.0
        %782 = vmatmul.mubr.f32.gmra.mxu0 %v300
        %v783 = vpop.f32.mrf.mxu0
        %v784 = vadd.f32 0.0, %v783
        %v785 = vpop.f32.mrf.mxu0
        %786 = vmatprep.mubr.f32.mxu0 0.0
        %787 = vmatmul.mubr.f32.gmra.mxu0 %v303
        %v788 = vpop.f32.mrf.mxu0
        %v789 = vadd.f32 0.0, %v788
        %v790 = vpop.f32.mrf.mxu0
        %791 = vmatprep.mubr.f32.mxu0 0.0
        %792 = vmatmul.mubr.f32.gmra.mxu0 %v306
        %v793 = vpop.f32.mrf.mxu0
        %v794 = vadd.f32 0.0, %v793
        %v795 = vpop.f32.mrf.mxu0
        %796 = vmatprep.mubr.f32.mxu0 0.0
        %797 = vmatmul.mubr.f32.gmra.mxu0 %v309
        %v798 = vpop.f32.mrf.mxu0
        %v799 = vadd.f32 0.0, %v798
        %v800 = vpop.f32.mrf.mxu0
        %801 = vmatprep.mubr.f32.mxu0 0.0
        %802 = vmatmul.mubr.f32.gmra.mxu0 %v312
        %v803 = vpop.f32.mrf.mxu0
        %v804 = vadd.f32 0.0, %v803
        %v805 = vpop.f32.mrf.mxu0
        %806 = vmatprep.mubr.f32.mxu0 0.0
        %807 = vmatmul.mubr.f32.gmra.mxu0 %v315
        %v808 = vpop.f32.mrf.mxu0
        %v809 = vadd.f32 0.0, %v808
        %v810 = vpop.f32.mrf.mxu0
        %811 = vmatprep.mubr.f32.mxu0 0.0
        %812 = vmatmul.mubr.f32.gmra.mxu0 %v318
        %v813 = vpop.f32.mrf.mxu0
        %v814 = vadd.f32 0.0, %v813
        %v815 = vpop.f32.mrf.mxu0
        %816 = vmatprep.mubr.f32.mxu0 0.0
        %817 = vmatmul.mubr.f32.gmra.mxu0 %v321
        %v818 = vpop.f32.mrf.mxu0
        %v819 = vadd.f32 0.0, %v818
        %v820 = vpop.f32.mrf.mxu0
        %821 = vmatprep.mubr.f32.mxu0 0.0
        %822 = vmatmul.mubr.f32.gmra.mxu0 %v324
        %v823 = vpop.f32.mrf.mxu0
        %v824 = vadd.f32 0.0, %v823
        %v825 = vpop.f32.mrf.mxu0
        %826 = vmatprep.mubr.f32.mxu0 0.0
        %827 = vmatmul.mubr.f32.gmra.mxu0 %v327
        %v828 = vpop.f32.mrf.mxu0
        %v829 = vadd.f32 0.0, %v828
        %v830 = vpop.f32.mrf.mxu0
        %831 = vmatprep.mubr.f32.mxu0 0.0
        %832 = vmatmul.mubr.f32.gmra.mxu0 %v330
        %v833 = vpop.f32.mrf.mxu0
        %v834 = vadd.f32 0.0, %v833
        %v835 = vpop.f32.mrf.mxu0
        %836 = vmatprep.mubr.f32.mxu0 0.0
        %837 = vmatmul.mubr.f32.gmra.mxu0 %v333
        %v838 = vpop.f32.mrf.mxu0
        %v839 = vadd.f32 0.0, %v838
        %v840 = vpop.f32.mrf.mxu0
        %841 = vmatprep.mubr.f32.mxu0 0.0
        %842 = vmatmul.mubr.f32.gmra.mxu0 %v504
        %v843 = vpop.f32.mrf.mxu0
        %v844 = vadd.f32 0.0, %v843
        %v845 = vpop.f32.mrf.mxu0
        %846 = vmatprep.mubr.f32.mxu0 0.0
        %847 = vmatmul.mubr.f32.gmra.mxu0 %v507
        %v848 = vpop.f32.mrf.mxu0
        %v849 = vadd.f32 0.0, %v848
        %v850 = vpop.f32.mrf.mxu0
        %851 = vmatprep.mubr.f32.mxu0 0.0
        %852 = vmatmul.mubr.f32.gmra.mxu0 %v709
        %v853 = vpop.f32.mrf.mxu0
        %v854 = vadd.f32 0.0, %v853
        %v855 = vpop.f32.mrf.mxu0
        %856 = vmatprep.mubr.f32.mxu0 0.0
        %857 = vmatmul.mubr.f32.gmra.mxu0 %v712
        %v858 = vpop.f32.mrf.mxu0
        %v859 = vadd.f32 0.0, %v858
        %v860 = vpop.f32.mrf.mxu0
        %861 = vdwg.mxu0
        %v862 = vld [vmem:[#allocation2] sm:$0xff]
        %v863 = vld [vmem:[#allocation2 + $0x8] sm:$0xff]
        %v864 = vld [vmem:[#allocation2 + $0x10] sm:$0xff]
        %v865 = vld [vmem:[#allocation2 + $0x18] sm:$0xff]
        %v866 = vld [vmem:[#allocation2 + $0x20] sm:$0xff]
        %v867 = vld [vmem:[#allocation2 + $0x28] sm:$0xff]
        %v868 = vld [vmem:[#allocation2 + $0x30] sm:$0xff]
        %v869 = vld [vmem:[#allocation2 + $0x38] sm:$0xff]
        %v870 = vld [vmem:[#allocation2 + $0x40] sm:$0xff]
        %v871 = vld [vmem:[#allocation2 + $0x48] sm:$0xff]
        %v872 = vld [vmem:[#allocation2 + $0x50] sm:$0xff]
        %v873 = vld [vmem:[#allocation2 + $0x58] sm:$0xff]
        %v874 = vld [vmem:[#allocation2 + $0x60] sm:$0xff]
        %v875 = vld [vmem:[#allocation2 + $0x68] sm:$0xff]
        %v876 = vld [vmem:[#allocation2 + $0x70] sm:$0xff]
        %v877 = vld [vmem:[#allocation2 + $0x78] sm:$0xff]
        %v878 = vadd.f32 %v862, %v784
        %v879 = vadd.f32 %v863, %v789
        %v880 = vadd.f32 %v864, %v794
        %v881 = vadd.f32 %v865, %v799
        %v882 = vadd.f32 %v866, %v804
        %v883 = vadd.f32 %v867, %v809
        %v884 = vadd.f32 %v868, %v814
        %v885 = vadd.f32 %v869, %v819
        %v886 = vadd.f32 %v870, %v824
        %v887 = vadd.f32 %v871, %v829
        %v888 = vadd.f32 %v872, %v834
        %v889 = vadd.f32 %v873, %v839
        %v890 = vadd.f32 %v874, %v844
        %v891 = vadd.f32 %v875, %v849
        %v892 = vadd.f32 %v876, %v854
        %v893 = vadd.f32 %v877, %v859
        %894 = vst [vmem:[#allocation2] sm:$0xff] %v878
        %895 = vst [vmem:[#allocation2 + $0x8] sm:$0xff] %v879
        %896 = vst [vmem:[#allocation2 + $0x10] sm:$0xff] %v880
        %897 = vst [vmem:[#allocation2 + $0x18] sm:$0xff] %v881
        %898 = vst [vmem:[#allocation2 + $0x20] sm:$0xff] %v882
        %899 = vst [vmem:[#allocation2 + $0x28] sm:$0xff] %v883
        %900 = vst [vmem:[#allocation2 + $0x30] sm:$0xff] %v884
        %901 = vst [vmem:[#allocation2 + $0x38] sm:$0xff] %v885
        %902 = vst [vmem:[#allocation2 + $0x40] sm:$0xff] %v886
        %903 = vst [vmem:[#allocation2 + $0x48] sm:$0xff] %v887
        %904 = vst [vmem:[#allocation2 + $0x50] sm:$0xff] %v888
        %905 = vst [vmem:[#allocation2 + $0x58] sm:$0xff] %v889
        %906 = vst [vmem:[#allocation2 + $0x60] sm:$0xff] %v890
        %907 = vst [vmem:[#allocation2 + $0x68] sm:$0xff] %v891
        %908 = vst [vmem:[#allocation2 + $0x70] sm:$0xff] %v892
        %909 = vst [vmem:[#allocation2 + $0x78] sm:$0xff] %v893
        %v910 = vld [vmem:[#allocation2] sm:$0xff]
        %v911 = vld [vmem:[#allocation2 + $0x8] sm:$0xff]
        %v912 = vld [vmem:[#allocation2 + $0x10] sm:$0xff]
        %v913 = vld [vmem:[#allocation2 + $0x18] sm:$0xff]
        %v914 = vld [vmem:[#allocation2 + $0x20] sm:$0xff]
        %v915 = vld [vmem:[#allocation2 + $0x28] sm:$0xff]
        %v916 = vld [vmem:[#allocation2 + $0x30] sm:$0xff]
        %v917 = vld [vmem:[#allocation2 + $0x38] sm:$0xff]
        %v918 = vld [vmem:[#allocation2 + $0x40] sm:$0xff]
        %v919 = vld [vmem:[#allocation2 + $0x48] sm:$0xff]
        %v920 = vld [vmem:[#allocation2 + $0x50] sm:$0xff]
        %v921 = vld [vmem:[#allocation2 + $0x58] sm:$0xff]
        %v922 = vld [vmem:[#allocation2 + $0x60] sm:$0xff]
        %v923 = vld [vmem:[#allocation2 + $0x68] sm:$0xff]
        %v924 = vld [vmem:[#allocation2 + $0x70] sm:$0xff]
        %v925 = vld [vmem:[#allocation2 + $0x78] sm:$0xff]
        %v926 = vld [vmem:[%s3] sm:$0x1]
        %v928 = vlaneseq
        %v929 = vshrl.u32 %v928, 7
        %v930 = vsub.s32 0, %v929
        %v931 = vrot.slane %v926, %v930
        %v933 = vadd.f32 %v910, %v931
        %v934 = vadd.f32 %v911, %v931
        %v935 = vadd.f32 %v912, %v931
        %v936 = vadd.f32 %v913, %v931
        %v937 = vadd.f32 %v914, %v931
        %v938 = vadd.f32 %v915, %v931
        %v939 = vadd.f32 %v916, %v931
        %v940 = vadd.f32 %v917, %v931
        %v941 = vadd.f32 %v918, %v931
        %v942 = vadd.f32 %v919, %v931
        %v943 = vadd.f32 %v920, %v931
        %v944 = vadd.f32 %v921, %v931
        %v945 = vadd.f32 %v922, %v931
        %v946 = vadd.f32 %v923, %v931
        %v947 = vadd.f32 %v924, %v931
        %v948 = vadd.f32 %v925, %v931
        %v949 = vmax.f32 %v933, 0.0
        %v950 = vmax.f32 %v934, 0.0
        %v951 = vmax.f32 %v935, 0.0
        %v952 = vmax.f32 %v936, 0.0
        %v953 = vmax.f32 %v937, 0.0
        %v954 = vmax.f32 %v938, 0.0
        %v955 = vmax.f32 %v939, 0.0
        %v956 = vmax.f32 %v940, 0.0
        %v957 = vmax.f32 %v941, 0.0
        %v958 = vmax.f32 %v942, 0.0
        %v959 = vmax.f32 %v943, 0.0
        %v960 = vmax.f32 %v944, 0.0
        %v961 = vmax.f32 %v945, 0.0
        %v962 = vmax.f32 %v946, 0.0
        %v963 = vmax.f32 %v947, 0.0
        %v964 = vmax.f32 %v948, 0.0
        %v965 = vld [vmem:[%s261] sm:$0xff]
        %v966 = vld [vmem:[%s261 + $0x8] sm:$0xff]
        %v967 = vld [vmem:[%s261 + $0x10] sm:$0xff]
        %v968 = vld [vmem:[%s261 + $0x18] sm:$0xff]
        %v969 = vld [vmem:[%s261 + $0x20] sm:$0xff]
        %v970 = vld [vmem:[%s261 + $0x28] sm:$0xff]
        %v971 = vld [vmem:[%s261 + $0x30] sm:$0xff]
        %v972 = vld [vmem:[%s261 + $0x38] sm:$0xff]
        %v973 = vld [vmem:[%s261 + $0x40] sm:$0xff]
        %v974 = vld [vmem:[%s261 + $0x48] sm:$0xff]
        %v975 = vld [vmem:[%s261 + $0x50] sm:$0xff]
        %v976 = vld [vmem:[%s261 + $0x58] sm:$0xff]
        %v977 = vld [vmem:[%s261 + $0x60] sm:$0xff]
        %v978 = vld [vmem:[%s261 + $0x68] sm:$0xff]
        %v979 = vld [vmem:[%s261 + $0x70] sm:$0xff]
        %v980 = vld [vmem:[%s261 + $0x78] sm:$0xff]
        %v981 = vadd.f32 %v949, %v965
        %v982 = vadd.f32 %v950, %v966
        %v983 = vadd.f32 %v951, %v967
        %v984 = vadd.f32 %v952, %v968
        %v985 = vadd.f32 %v953, %v969
        %v986 = vadd.f32 %v954, %v970
        %v987 = vadd.f32 %v955, %v971
        %v988 = vadd.f32 %v956, %v972
        %v989 = vadd.f32 %v957, %v973
        %v990 = vadd.f32 %v958, %v974
        %v991 = vadd.f32 %v959, %v975
        %v992 = vadd.f32 %v960, %v976
        %v993 = vadd.f32 %v961, %v977
        %v994 = vadd.f32 %v962, %v978
        %v995 = vadd.f32 %v963, %v979
        %v996 = vadd.f32 %v964, %v980
        %997 = vst [vmem:[%s242] sm:$0xff] %v981
        %998 = vst [vmem:[%s242 + $0x8] sm:$0xff] %v982
        %999 = vst [vmem:[%s242 + $0x10] sm:$0xff] %v983
        %1000 = vst [vmem:[%s242 + $0x18] sm:$0xff] %v984
        %1001 = vst [vmem:[%s242 + $0x20] sm:$0xff] %v985
        %1002 = vst [vmem:[%s242 + $0x28] sm:$0xff] %v986
        %1003 = vst [vmem:[%s242 + $0x30] sm:$0xff] %v987
        %1004 = vst [vmem:[%s242 + $0x38] sm:$0xff] %v988
        %1005 = vst [vmem:[%s242 + $0x40] sm:$0xff] %v989
        %1006 = vst [vmem:[%s242 + $0x48] sm:$0xff] %v990
        %1007 = vst [vmem:[%s242 + $0x50] sm:$0xff] %v991
        %1008 = vst [vmem:[%s242 + $0x58] sm:$0xff] %v992
        %1009 = vst [vmem:[%s242 + $0x60] sm:$0xff] %v993
        %1010 = vst [vmem:[%s242 + $0x68] sm:$0xff] %v994
        %1011 = vst [vmem:[%s242 + $0x70] sm:$0xff] %v995
        %1012 = vst [vmem:[%s242 + $0x78] sm:$0xff] %v996
        %s1013 = sand.u32 %s140, 1
        %s1014 = scalar_lea.sflag [#allocation4], %s1013
        %s1015 = sand.u32 %s140, 1
        %s1016 = smul.addr %s1015, 128
        %s1017 = scalar_lea.vmem [#allocation3], %s1016
        // Predicated region
        $region37: #{tpu_custom_call.1} parent=35 // pred_check
          %p1018 = pneg %p150
        $region38: #{tpu_custom_call.1} parent=35 // pred_check_branch
          %1020 = sbr.rel (%p1018) target = $region40
        $region39: #{tpu_custom_call.1} parent=35 // pred_region
          %s1021 = smul.u32 8, %s23
          %s1023 = ssub.s32 2048, 2048
          %1024 = vsyncadd %s1014, %s1023
          %s1025 = smul.addr %s1021, 2
          %s1026 = smul.addr %s22, 32
          %s1027 = sadd.s32 %s1025, %s1026
          %s1028 = smul.addr %s1027, 128
          %s1029 = scalar_lea.hbm %s4, %s1028
          %s1030 = sshll.u32 %s1017, 4
          %s1031 = int_to_ptr.vmem [resolvable:$true] %s1030
          %1036 = dma.vmem_to_hbm [thread:$0]  %s1031, 2048, %s1029, %s1014, 128, 128, 8
        $region40: #{tpu_custom_call.1} parent=35 // pred_fallthru
          _
      $region36: #{tpu_custom_call.1} parent=5 // pred_fallthru
        _
      %p1037 = scmp.le.s32.totalorder 2, %s13
      // Predicated region
      $region41: #{tpu_custom_call.1} parent=5 // pred_check
        %p1038 = pneg %p1037
      $region42: #{tpu_custom_call.1} parent=5 // pred_check_branch
        %1040 = sbr.rel (%p1038) target = $region44
      $region43: #{tpu_custom_call.1} parent=5 // pred_region
        %s1041 = ssub.s32 %s13, 2
        // Predicated region
        $region45: #{tpu_custom_call.1} parent=43 // pred_check
          %p1042 = pneg %p156
        $region46: #{tpu_custom_call.1} parent=43 // pred_check_branch
          %1044 = sbr.rel (%p1042) target = $region48
        $region47: #{tpu_custom_call.1} parent=43 // pred_region
          %s1045 = sand.u32 %s141, 1
          %s1046 = scalar_lea.sflag [#allocation4], %s1045
          %s1047 = sand.u32 %s141, 1
          %s1048 = smul.addr %s1047, 128
          %s1049 = scalar_lea.vmem [#allocation3], %s1048
          %1050 = dma.done %s1046, 2048
        $region48: #{tpu_custom_call.1} parent=43 // pred_fallthru
          _
      $region44: #{tpu_custom_call.1} parent=5 // pred_fallthru
        _
    $region6: #{tpu_custom_call.1} parent=1 // loop_footer
      %s17 = sadd.s32 1, %s13
    $region7: #{tpu_custom_call.1} parent=1 // loop_footer_branch
      %12 = sbr.rel target = $region3
    $region8: #{tpu_custom_call.1} parent=1 // loop_exit
      _
    %1051 = vsyncpa [#allocation4], 1
    %s1052 = scalar_lea.sflag [#allocation4], 1
    %1053 = vsyncpa %s1052, 1

</llo_original>
